<compile_context>
chip_gen: v7x
topology: tpu7x:2x2x1
jax: 0.10.0
libtpu: 0.0.40
codegen_flags: <defaults>
</compile_context>

<pallas_src>
import functools

import jax
import jax.numpy as jnp
from jax.experimental import pallas as pl
from jax.experimental.pallas import tpu as pltpu

# ------------------------- problem sizes (small) -------------------------
N_SUPPORT = 6      # 3 classes x 2 shots
N_QUERY = 4
C, H, W = 4, 8, 8
COUT = 8           # conv output channels
D = 32             # embedding dim
N_WAY = 3
N_EPISODES = 4     # batched onto the "parallel" grid axis

K_PAD = 64         # conv contraction dim (C*9 + 1 bias col = 37) padded up
NQ_PAD = 8         # query rows padded to a full sublane group
LANES = 128        # lane-dense output width


# ------------------------------- kernel ----------------------------------
def _proto_net_kernel(patch_ref, wc_ref, red_ref, wf_ref, bf_ref, out_ref,
                      *, n_way):
    f32 = jnp.float32
    nq_pad = out_ref.shape[1]
    lanes = out_ref.shape[2]

    # conv3x3 + ReLU, transposed so the long pixel axis (640) is lane-dense.
    # wc: [COUT, K_PAD], patches^T: [K_PAD, NPIX] -> act_T: [COUT, NPIX]
    act_t = jnp.maximum(
        jnp.dot(wc_ref[...], patch_ref[0], preferred_element_type=f32), 0.0)

    # Fused {global-avg-pool, per-class prototype mean}: contract pixel axis.
    # red: [n_way + nq_pad, NPIX]  ->  pooled: [n_way + nq_pad, COUT]
    pooled = jax.lax.dot_general(red_ref[...], act_t,
                                 (((1,), (1,)), ((), ())),
                                 preferred_element_type=f32)

    # fc projection (rows of red sum to 1 -> exactly one bias add per row,
    # matching the reference formulation).
    z = jnp.dot(pooled, wf_ref[...], preferred_element_type=f32) + bf_ref[...]

    z_proto = z[:n_way, :]                                   # [n_way, D]
    z_query = z[n_way:, :]                                   # [nq_pad, D]

    # euclidean cdist -> negated scores (padded query rows are garbage and
    # get sliced off in the wrapper).
    q_sq = jnp.sum(z_query * z_query, axis=1, keepdims=True)        # [nq_pad,1]
    p_sq = jnp.sum(z_proto * z_proto, axis=1)[None, :]               # [1,n_way]
    cross = jax.lax.dot_general(z_query, z_proto,
                                (((1,), (1,)), ((), ())),
                                preferred_element_type=f32)          # [nq_pad,n_way]
    d2 = jnp.maximum(q_sq + p_sq - 2.0 * cross, 0.0)
    # TODO(synk): sqrt(0) would give NaN grads if a backward pass is added.
    scores = -jnp.sqrt(d2)                                           # [nq_pad,n_way]

    # Lane-dense store: embed the n_way columns into 128 lanes with a tiny
    # iota-built selection matmul so the output store is an unmasked full vreg.
    row = jax.lax.broadcasted_iota(jnp.int32, (n_way, lanes), 0)
    col = jax.lax.broadcasted_iota(jnp.int32, (n_way, lanes), 1)
    embed = jnp.where(row == col, 1.0, 0.0).astype(f32)              # [n_way,128]
    out_ref[0] = jnp.dot(scores, embed, preferred_element_type=f32)  # [nq_pad,128]


# ------------------------------- glue ------------------------------------
def im2col_3x3(x):
    """x: [N, C, H, W] -> patches [N*H*W, C*9], pad=1, stride=1 (reference)."""
    n, c, h, w = x.shape
    xp = jnp.pad(x, ((0, 0), (0, 0), (1, 1), (1, 1)))
    cols = []
    for dh in range(3):
        for dw in range(3):
            cols.append(xp[:, :, dh:dh + h, dw:dw + w])              # [N,C,H,W]
    p = jnp.stack(cols, axis=2)                                      # [N,C,9,H,W]
    return p.transpose(0, 3, 4, 1, 2).reshape(n * h * w, c * 9)


def im2col_3x3_t(x):
    """x: [B, N, C, H, W] -> transposed patches [B, C*9, N*H*W]."""
    b, n, c, h, w = x.shape
    xp = jnp.pad(x, ((0, 0), (0, 0), (0, 0), (1, 1), (1, 1)))
    cols = []
    for dh in range(3):
        for dw in range(3):
            cols.append(xp[:, :, :, dh:dh + h, dw:dw + w])           # [B,N,C,H,W]
    p = jnp.stack(cols, axis=3)                                      # [B,N,C,9,H,W]
    return p.transpose(0, 2, 3, 1, 4, 5).reshape(b, c * 9, n * h * w)


def build_constants(support_labels, params, *, n_way, n_support, n_query, hw):
    """One-time setup (off the per-episode path): conv bias folded into the
    conv weight + zero-pad K to a lane-friendly size; fused pool+prototype
    reduce matrix (depends only on labels / shapes / weights)."""
    f32 = jnp.float32

    wc = jnp.concatenate([params["conv_w"], params["conv_b"]], axis=0)  # [C*9+1,COUT]
    wc = jnp.pad(wc, ((0, K_PAD - wc.shape[0]), (0, 0)))                # [K_PAD,COUT]
    conv_w_aug_t = wc.T                                                 # [COUT,K_PAD]

    onehot = (support_labels[None, :] ==
              jnp.arange(n_way, dtype=support_labels.dtype)[:, None]
              ).astype(f32)                                             # [n_way, ns]
    counts = jnp.sum(onehot, axis=1, keepdims=True)                     # [n_way, 1]
    w_img = jnp.concatenate([
        jnp.concatenate([onehot / counts,
                         jnp.zeros((n_way, n_query), f32)], axis=1),
        jnp.concatenate([jnp.zeros((NQ_PAD, n_support), f32),
                         jnp.pad(jnp.eye(n_query, dtype=f32),
                                 ((0, NQ_PAD - n_query), (0, 0)))], axis=1),
    ], axis=0)                                   # [n_way+NQ_PAD, ns+nq]
    reduce_mat = jnp.repeat(w_img, hw, axis=1) / float(hw)
    return conv_w_aug_t, reduce_mat              # [n_way+NQ_PAD, (ns+nq)*hw]


@functools.partial(jax.jit, static_argnames=("n_way",))
def prototypical_forward_batch(support_images, query_images, conv_w_aug_t,
                               reduce_mat, fc_w, fc_b, *, n_way):
    """support_images: [B, ns, C, H, W]; query_images: [B, nq, C, H, W]."""
    f32 = jnp.float32
    bsz, ns = support_images.shape[:2]
    nq = query_images.shape[1]
    h, w = support_images.shape[3:]
    hw = h * w
    npix = (ns + nq) * hw
    rows = reduce_mat.shape[0]                   # n_way + NQ_PAD
    nq_pad = rows - n_way

    # One backbone slab per episode: support images first, then queries.
    all_images = jnp.concatenate([support_images, query_images], axis=1)
    patches_t = im2col_3x3_t(all_images)                          # [B, C*9, NPIX]
    ones_row = jnp.ones((bsz, 1, npix), f32)                      # folds conv bias
    pad_rows = jnp.zeros((bsz, K_PAD - patches_t.shape[1] - 1, npix), f32)
    patches_aug_t = jnp.concatenate([patches_t, ones_row, pad_rows], axis=1)

    kernel = functools.partial(_proto_net_kernel, n_way=n_way)
    out = pl.pallas_call(
        kernel,
        out_shape=jax.ShapeDtypeStruct((bsz, nq_pad, LANES), f32),
        grid=(bsz,),
        in_specs=[
            pl.BlockSpec((1, K_PAD, npix), lambda b: (b, 0, 0)),   # per-episode
            pl.BlockSpec((COUT, K_PAD), lambda b: (0, 0)),         # shared
            pl.BlockSpec((rows, npix), lambda b: (0, 0)),          # shared
            pl.BlockSpec((COUT, D), lambda b: (0, 0)),             # shared
            pl.BlockSpec((1, D), lambda b: (0, 0)),                # shared
        ],
        out_specs=pl.BlockSpec((1, nq_pad, LANES), lambda b: (b, 0, 0)),
        compiler_params=pltpu.CompilerParams(
            dimension_semantics=("parallel",)),                    # both TCs on v7x
    )(patches_aug_t, conv_w_aug_t, reduce_mat, fc_w, fc_b)

    return out[:, :nq, :n_way]


# ------------------------- pure-JAX reference -----------------------------
def reference_forward(support_images, support_labels, query_images, params,
                      *, n_way):
    def backbone(x):
        p = im2col_3x3(x)                                         # [N*H*W, C*9]
        a = jnp.maximum(p @ params["conv_w"] + params["conv_b"], 0.0)
        a = a.reshape(x.shape[0], -1, COUT).mean(axis=1)          # global avg pool
        return a @ params["fc_w"] + params["fc_b"]                # [N, D]

    z_s = backbone(support_images)
    z_q = backbone(query_images)
    protos = jnp.stack([z_s[support_labels == l].mean(axis=0)
                        for l in range(n_way)], axis=0)
    dists = jnp.sqrt(jnp.sum((z_q[:, None, :] - protos[None, :, :]) ** 2, -1))
    return -dists


# --------------------------------- main -----------------------------------
if __name__ == "__main__":
    key = jax.random.PRNGKey(0)
    k1, k2, k3, k4, k5, k6 = jax.random.split(key, 6)

    support_images = jax.random.normal(
        k1, (N_EPISODES, N_SUPPORT, C, H, W), jnp.float32)
    query_images = jax.random.normal(
        k2, (N_EPISODES, N_QUERY, C, H, W), jnp.float32)
    support_labels = jnp.array([0, 0, 1, 1, 2, 2], dtype=jnp.int32)

    params = {
        # conv weight in matmul form [C*3*3, COUT] (== torch [COUT,C,3,3] flat.T)
        "conv_w": 0.1 * jax.random.normal(k3, (C * 9, COUT), jnp.float32),
        "conv_b": 0.1 * jax.random.normal(k4, (1, COUT), jnp.float32),
        "fc_w": 0.1 * jax.random.normal(k5, (COUT, D), jnp.float32),
        "fc_b": 0.1 * jax.random.normal(k6, (1, D), jnp.float32),
    }

    # n_way = len(unique(labels)) once, on host, off the jitted hot path
    # (static arg; the torch module has the same labels-are-{0..n_way-1} assumption).
    labels_list = jax.device_get(support_labels).tolist()
    n_way = len(set(labels_list))
    assert sorted(set(labels_list)) == list(range(n_way)), \
        "support labels must be exactly {0..n_way-1}"

    conv_w_aug_t, reduce_mat = build_constants(
        support_labels, params, n_way=n_way, n_support=N_SUPPORT,
        n_query=N_QUERY, hw=H * W)

    scores = prototypical_forward_batch(
        support_images, query_images, conv_w_aug_t, reduce_mat,
        params["fc_w"], params["fc_b"], n_way=n_way)
    jax.block_until_ready(scores)

    refs = jnp.stack([
        reference_forward(support_images[b], support_labels, query_images[b],
                          params, n_way=n_way)
        for b in range(N_EPISODES)], axis=0)

    assert scores.shape == (N_EPISODES, N_QUERY, N_WAY), scores.shape
    assert jnp.allclose(scores, refs, atol=1e-3, rtol=1e-3), (scores, refs)
    print("KERNEL_OK")
</pallas_src>

<mosaic_0001>
module attributes {stable_mosaic.version = 11 : i64} {
  func.func @_proto_net_kernel(%arg0: i32, %arg1: memref<1x64x640xf32, #tpu.memory_space<vmem>>, %arg2: memref<8x64xf32, #tpu.memory_space<vmem>>, %arg3: memref<11x640xf32, #tpu.memory_space<vmem>>, %arg4: memref<8x32xf32, #tpu.memory_space<vmem>>, %arg5: memref<1x32xf32, #tpu.memory_space<vmem>>, %arg6: memref<1x8x128xf32, #tpu.memory_space<vmem>>) attributes {dimension_semantics = [#tpu.dimension_semantics<parallel>], iteration_bounds = array<i64: 4>, scalar_prefetch = 0 : i64, scratch_operands = 0 : i64, tpu.core_type = #tpu.core_type<tc>, window_params = [{transform_indices = @transform_0, window_bounds = array<i64: 1, 64, 640>}, {pipeline_mode = #tpu.pipeline_mode<synchronous>, transform_indices = @transform_1, window_bounds = array<i64: 8, 64>}, {pipeline_mode = #tpu.pipeline_mode<synchronous>, transform_indices = @transform_2, window_bounds = array<i64: 11, 640>}, {pipeline_mode = #tpu.pipeline_mode<synchronous>, transform_indices = @transform_3, window_bounds = array<i64: 8, 32>}, {pipeline_mode = #tpu.pipeline_mode<synchronous>, transform_indices = @transform_4, window_bounds = array<i64: 1, 32>}, {transform_indices = @transform_5, window_bounds = array<i64: 1, 8, 128>}]} {
    %c0 = arith.constant 0 : index
    %c0_0 = arith.constant 0 : index
    %0 = vector.load %arg2[%c0, %c0_0] : memref<8x64xf32, #tpu.memory_space<vmem>>, vector<8x64xf32>
    %c0_1 = arith.constant 0 : index
    %c0_2 = arith.constant 0 : index
    %c0_3 = arith.constant 0 : index
    %1 = vector.load %arg1[%c0_1, %c0_2, %c0_3] : memref<1x64x640xf32, #tpu.memory_space<vmem>>, vector<1x64x640xf32>
    %2 = vector.shape_cast %1 : vector<1x64x640xf32> to vector<64x640xf32>
    %cst = arith.constant dense<0.000000e+00> : vector<8x640xf32>
    %3 = tpu.matmul %0, %2, %cst {dimension_numbers = #tpu.dot_dimension_numbers<[1], [0], [0], [1], [0, 0, 1, 1], [], []>} : vector<8x64xf32>, vector<64x640xf32>, vector<8x640xf32> -> vector<8x640xf32>
    %cst_4 = arith.constant 0.000000e+00 : f32
    %4 = vector.broadcast %cst_4 : f32 to vector<8x640xf32>
    %5 = arith.maximumf %3, %4 : vector<8x640xf32>
    %c0_5 = arith.constant 0 : index
    %c0_6 = arith.constant 0 : index
    %6 = vector.load %arg3[%c0_5, %c0_6] : memref<11x640xf32, #tpu.memory_space<vmem>>, vector<11x640xf32>
    %cst_7 = arith.constant dense<0.000000e+00> : vector<11x8xf32>
    %7 = tpu.matmul %6, %5, %cst_7 {dimension_numbers = #tpu.dot_dimension_numbers<[1], [1], [0], [0], [0, 0, 1, 0], [], []>} : vector<11x640xf32>, vector<8x640xf32>, vector<11x8xf32> -> vector<11x8xf32>
    %c0_8 = arith.constant 0 : index
    %c0_9 = arith.constant 0 : index
    %8 = vector.load %arg4[%c0_8, %c0_9] : memref<8x32xf32, #tpu.memory_space<vmem>>, vector<8x32xf32>
    %cst_10 = arith.constant dense<0.000000e+00> : vector<11x32xf32>
    %9 = tpu.matmul %7, %8, %cst_10 {dimension_numbers = #tpu.dot_dimension_numbers<[1], [0], [0], [1], [0, 0, 1, 1], [], []>} : vector<11x8xf32>, vector<8x32xf32>, vector<11x32xf32> -> vector<11x32xf32>
    %c0_11 = arith.constant 0 : index
    %c0_12 = arith.constant 0 : index
    %10 = vector.load %arg5[%c0_11, %c0_12] : memref<1x32xf32, #tpu.memory_space<vmem>>, vector<1x32xf32>
    %11 = vector.broadcast %10 : vector<1x32xf32> to vector<11x32xf32>
    %12 = arith.addf %9, %11 : vector<11x32xf32>
    %13 = vector.extract_strided_slice %12 {offsets = [0, 0], sizes = [3, 32], strides = [1, 1]} : vector<11x32xf32> to vector<3x32xf32>
    %14 = vector.extract_strided_slice %12 {offsets = [3, 0], sizes = [8, 32], strides = [1, 1]} : vector<11x32xf32> to vector<8x32xf32>
    %15 = arith.mulf %14, %14 : vector<8x32xf32>
    %cst_13 = arith.constant dense<0.000000e+00> : vector<8xf32>
    %16 = vector.multi_reduction <add>, %15, %cst_13 [1] : vector<8x32xf32> to vector<8xf32>
    %17 = vector.shape_cast %16 : vector<8xf32> to vector<8x1xf32>
    %18 = arith.mulf %13, %13 : vector<3x32xf32>
    %cst_14 = arith.constant dense<0.000000e+00> : vector<3xf32>
    %19 = vector.multi_reduction <add>, %18, %cst_14 [1] : vector<3x32xf32> to vector<3xf32>
    %20 = vector.shape_cast %19 : vector<3xf32> to vector<1x3xf32>
    %cst_15 = arith.constant dense<0.000000e+00> : vector<8x3xf32>
    %21 = tpu.matmul %14, %13, %cst_15 {dimension_numbers = #tpu.dot_dimension_numbers<[1], [1], [0], [0], [0, 0, 1, 0], [], []>} : vector<8x32xf32>, vector<3x32xf32>, vector<8x3xf32> -> vector<8x3xf32>
    %22 = vector.broadcast %17 : vector<8x1xf32> to vector<8x3xf32>
    %23 = vector.broadcast %20 : vector<1x3xf32> to vector<8x3xf32>
    %24 = arith.addf %22, %23 : vector<8x3xf32>
    %cst_16 = arith.constant 2.000000e+00 : f32
    %25 = vector.broadcast %cst_16 : f32 to vector<8x3xf32>
    %26 = arith.mulf %25, %21 : vector<8x3xf32>
    %27 = arith.subf %24, %26 : vector<8x3xf32>
    %cst_17 = arith.constant 0.000000e+00 : f32
    %28 = vector.broadcast %cst_17 : f32 to vector<8x3xf32>
    %29 = arith.maximumf %27, %28 : vector<8x3xf32>
    %30 = math.sqrt %29 : vector<8x3xf32>
    %cst_18 = arith.constant 0.000000e+00 : f32
    %31 = vector.broadcast %cst_18 : f32 to vector<8x3xf32>
    %32 = arith.subf %31, %30 : vector<8x3xf32>
    %33 = tpu.iota {dimensions = array<i32: 0>} : vector<3x128xi32>
    %34 = tpu.iota {dimensions = array<i32: 1>} : vector<3x128xi32>
    %35 = arith.cmpi eq, %33, %34 : vector<3x128xi32>
    %cst_19 = arith.constant 1.000000e+00 : f32
    %cst_20 = arith.constant 0.000000e+00 : f32
    %36 = vector.broadcast %cst_19 : f32 to vector<3x128xf32>
    %37 = vector.broadcast %cst_20 : f32 to vector<3x128xf32>
    %38 = arith.select %35, %36, %37 : vector<3x128xi1>, vector<3x128xf32>
    %cst_21 = arith.constant dense<0.000000e+00> : vector<8x128xf32>
    %39 = tpu.matmul %32, %38, %cst_21 {dimension_numbers = #tpu.dot_dimension_numbers<[1], [0], [0], [1], [0, 0, 1, 1], [], []>} : vector<8x3xf32>, vector<3x128xf32>, vector<8x128xf32> -> vector<8x128xf32>
    %c0_22 = arith.constant 0 : index
    %c0_23 = arith.constant 0 : index
    %c0_24 = arith.constant 0 : index
    %40 = vector.load %arg6[%c0_22, %c0_23, %c0_24] : memref<1x8x128xf32, #tpu.memory_space<vmem>>, vector<1x8x128xf32>
    %41 = vector.shape_cast %40 : vector<1x8x128xf32> to vector<8x128xf32>
    %42 = vector.shape_cast %39 : vector<8x128xf32> to vector<1x8x128xf32>
    tpu.vector_store %arg6[%c0_22, %c0_23, %c0_24], %42 {strides = array<i32>} : memref<1x8x128xf32, #tpu.memory_space<vmem>>, vector<1x8x128xf32>,
    return
  }
  func.func @transform_0(%arg0: i32) -> (i32, i32, i32) {
    %c0_i32 = arith.constant 0 : i32
    %c0_i32_0 = arith.constant 0 : i32
    %c0_i32_1 = arith.constant 0 : i32
    return %arg0, %c0_i32, %c0_i32_0 : i32, i32, i32
  }
  func.func @transform_1(%arg0: i32) -> (i32, i32) {
    %c0_i32 = arith.constant 0 : i32
    %c0_i32_0 = arith.constant 0 : i32
    %c0_i32_1 = arith.constant 0 : i32
    return %c0_i32, %c0_i32_0 : i32, i32
  }
  func.func @transform_2(%arg0: i32) -> (i32, i32) {
    %c0_i32 = arith.constant 0 : i32
    %c0_i32_0 = arith.constant 0 : i32
    %c0_i32_1 = arith.constant 0 : i32
    return %c0_i32, %c0_i32_0 : i32, i32
  }
  func.func @transform_3(%arg0: i32) -> (i32, i32) {
    %c0_i32 = arith.constant 0 : i32
    %c0_i32_0 = arith.constant 0 : i32
    %c0_i32_1 = arith.constant 0 : i32
    return %c0_i32, %c0_i32_0 : i32, i32
  }
  func.func @transform_4(%arg0: i32) -> (i32, i32) {
    %c0_i32 = arith.constant 0 : i32
    %c0_i32_0 = arith.constant 0 : i32
    %c0_i32_1 = arith.constant 0 : i32
    return %c0_i32, %c0_i32_0 : i32, i32
  }
  func.func @transform_5(%arg0: i32) -> (i32, i32, i32) {
    %c0_i32 = arith.constant 0 : i32
    %c0_i32_0 = arith.constant 0 : i32
    %c0_i32_1 = arith.constant 0 : i32
    return %arg0, %c0_i32, %c0_i32_0 : i32, i32, i32
  }
}

</mosaic_0001>

<llo_original>
// kernel: prototypical_forward_batch.1
$region0: #{prototypical_forward_batch.1}
  #allocation0 [shape = 'u32[]', space=smem, size = 0x4, offset = 0x4, fixed_abs, tag = 'smem constant byte address 0x4 - core index']
  #allocation1 [shape = 'u32[144,128]{1,0:T(1,128)}', space=vmem, size = 0x12000, scoped, tag = 'internal scratch']
  %s0 = inlined_call_operand.vmem [shape: f32[4,64,640], index: 0, kind: input, shape index: {}]
  %s1 = inlined_call_operand.vmem [shape: f32[8,64], index: 1, kind: input, shape index: {}]
  %s2 = inlined_call_operand.vmem [shape: f32[11,640], index: 2, kind: input, shape index: {}]
  %s3 = inlined_call_operand.vmem [shape: f32[8,32], index: 3, kind: input, shape index: {}]
  %s4 = inlined_call_operand.vmem [shape: f32[1,32], index: 4, kind: input, shape index: {}]
  %s5 = inlined_call_operand.vmem [shape: f32[4,8,128], index: 5, kind: output, shape index: {}]
  %s6 = sld [smem:[#allocation0]]
  $region53: #{prototypical_forward_batch.1} parent=0
    _
  %s8 = ssub.s32 1, %s6
  %s9 = scalar_select 0, %s8, %s6
  loop: start=0, step=1, limit=6
  $region2: #{prototypical_forward_batch.1} parent=0 // loop_pre_header
    _
  $region3: #{prototypical_forward_batch.1} parent=0 // loop_header
    %s11 = sphi 0, %s15
    %p12 = scmp.ge.s32.totalorder %s11, 6
    %s21 = sphi 0, %s23
    %s24 = sphi 0, %s21
    %s25 = sphi 0, %s24
    %s41 = sphi 0, %s25
    %s45 = sphi 0, %s45
    %s47 = sphi 0, %s45
    %s48 = sphi 0, %s47
    %s62 = sphi 0, %s48
    %s66 = sphi 0, %s66
    %s68 = sphi 0, %s66
    %s69 = sphi 0, %s68
    %s83 = sphi 0, %s69
    %s87 = sphi 0, %s87
    %s89 = sphi 0, %s87
    %s90 = sphi 0, %s89
    %s104 = sphi 0, %s90
    %s108 = sphi 0, %s108
    %s110 = sphi 0, %s108
    %s111 = sphi 0, %s110
    %s125 = sphi 0, %s111
    %s131 = sphi 0, %s133
    %s134 = sphi 0, %s131
    %s135 = sphi 0, %s134
    %s151 = sphi 0, %s135
  $region4: #{prototypical_forward_batch.1} parent=0 // loop_header_branch
    %14 = sbr.rel (%p12) target = $region8
  $region5: #{prototypical_forward_batch.1} parent=0 // loop_body
    %s16 = ssub.s32 %s11, 1
    %s17 = ssub.s32 %s11, 2
    %s18 = sadd.s32 %s11, 1
    %s19 = ssub.s32 %s11, %s18
    %p20 = scmp.eq.s32.totalorder %s19, 0
    %s22 = sadd.s32 %s21, 1
    %s23 = scalar_select %p20, %s21, %s22
    %p26 = pneg %p20
    %p27 = scmp.eq.s32.totalorder %s11, 3
    %p28 = por %p26, %p27
    %p29 = scmp.ne.s32.totalorder %s21, %s24
    %p30 = scmp.eq.s32.totalorder %s11, 0
    %p31 = por %p29, %p30
    %p32 = scmp.ne.s32.totalorder %s21, %s24
    %p33 = scmp.eq.s32.totalorder %s16, 3
    %p34 = por %p32, %p33
    %p35 = scmp.ne.s32.totalorder %s24, %s25
    %p36 = scmp.eq.s32.totalorder %s16, 0
    %p37 = por %p35, %p36
    %p38 = scmp.ne.s32.totalorder %s24, %s25
    %p39 = scmp.eq.s32.totalorder %s17, 3
    %p40 = por %p38, %p39
    %p42 = scmp.ne.s32.totalorder %s25, %s41
    %p43 = scmp.eq.s32.totalorder %s17, 0
    %p44 = por %p42, %p43
    %s46 = sadd.s32 %s45, 1
    %p49 = scmp.eq.s32.totalorder %s11, 3
    %p50 = scmp.ne.s32.totalorder %s45, %s47
    %p51 = scmp.eq.s32.totalorder %s11, 0
    %p52 = por %p50, %p51
    %p53 = scmp.ne.s32.totalorder %s45, %s47
    %p54 = scmp.eq.s32.totalorder %s16, 3
    %p55 = por %p53, %p54
    %p56 = scmp.ne.s32.totalorder %s47, %s48
    %p57 = scmp.eq.s32.totalorder %s16, 0
    %p58 = por %p56, %p57
    %p59 = scmp.ne.s32.totalorder %s47, %s48
    %p60 = scmp.eq.s32.totalorder %s17, 3
    %p61 = por %p59, %p60
    %p63 = scmp.ne.s32.totalorder %s48, %s62
    %p64 = scmp.eq.s32.totalorder %s17, 0
    %p65 = por %p63, %p64
    %s67 = sadd.s32 %s66, 1
    %p70 = scmp.eq.s32.totalorder %s11, 3
    %p71 = scmp.ne.s32.totalorder %s66, %s68
    %p72 = scmp.eq.s32.totalorder %s11, 0
    %p73 = por %p71, %p72
    %p74 = scmp.ne.s32.totalorder %s66, %s68
    %p75 = scmp.eq.s32.totalorder %s16, 3
    %p76 = por %p74, %p75
    %p77 = scmp.ne.s32.totalorder %s68, %s69
    %p78 = scmp.eq.s32.totalorder %s16, 0
    %p79 = por %p77, %p78
    %p80 = scmp.ne.s32.totalorder %s68, %s69
    %p81 = scmp.eq.s32.totalorder %s17, 3
    %p82 = por %p80, %p81
    %p84 = scmp.ne.s32.totalorder %s69, %s83
    %p85 = scmp.eq.s32.totalorder %s17, 0
    %p86 = por %p84, %p85
    %s88 = sadd.s32 %s87, 1
    %p91 = scmp.eq.s32.totalorder %s11, 3
    %p92 = scmp.ne.s32.totalorder %s87, %s89
    %p93 = scmp.eq.s32.totalorder %s11, 0
    %p94 = por %p92, %p93
    %p95 = scmp.ne.s32.totalorder %s87, %s89
    %p96 = scmp.eq.s32.totalorder %s16, 3
    %p97 = por %p95, %p96
    %p98 = scmp.ne.s32.totalorder %s89, %s90
    %p99 = scmp.eq.s32.totalorder %s16, 0
    %p100 = por %p98, %p99
    %p101 = scmp.ne.s32.totalorder %s89, %s90
    %p102 = scmp.eq.s32.totalorder %s17, 3
    %p103 = por %p101, %p102
    %p105 = scmp.ne.s32.totalorder %s90, %s104
    %p106 = scmp.eq.s32.totalorder %s17, 0
    %p107 = por %p105, %p106
    %s109 = sadd.s32 %s108, 1
    %p112 = scmp.eq.s32.totalorder %s11, 3
    %p113 = scmp.ne.s32.totalorder %s108, %s110
    %p114 = scmp.eq.s32.totalorder %s11, 0
    %p115 = por %p113, %p114
    %p116 = scmp.ne.s32.totalorder %s108, %s110
    %p117 = scmp.eq.s32.totalorder %s16, 3
    %p118 = por %p116, %p117
    %p119 = scmp.ne.s32.totalorder %s110, %s111
    %p120 = scmp.eq.s32.totalorder %s16, 0
    %p121 = por %p119, %p120
    %p122 = scmp.ne.s32.totalorder %s110, %s111
    %p123 = scmp.eq.s32.totalorder %s17, 3
    %p124 = por %p122, %p123
    %p126 = scmp.ne.s32.totalorder %s111, %s125
    %p127 = scmp.eq.s32.totalorder %s17, 0
    %p128 = por %p126, %p127
    %s129 = ssub.s32 %s11, %s18
    %p130 = scmp.eq.s32.totalorder %s129, 0
    %s132 = sadd.s32 %s131, 1
    %s133 = scalar_select %p130, %s131, %s132
    %p136 = pneg %p130
    %p137 = scmp.eq.s32.totalorder %s11, 3
    %p138 = por %p136, %p137
    %p139 = scmp.ne.s32.totalorder %s131, %s134
    %p140 = scmp.eq.s32.totalorder %s11, 0
    %p141 = por %p139, %p140
    %p142 = scmp.ne.s32.totalorder %s131, %s134
    %p143 = scmp.eq.s32.totalorder %s16, 3
    %p144 = por %p142, %p143
    %p145 = scmp.ne.s32.totalorder %s134, %s135
    %p146 = scmp.eq.s32.totalorder %s16, 0
    %p147 = por %p145, %p146
    %p148 = scmp.ne.s32.totalorder %s134, %s135
    %p149 = scmp.eq.s32.totalorder %s17, 3
    %p150 = por %p148, %p149
    %p152 = scmp.ne.s32.totalorder %s135, %s151
    %p153 = scmp.eq.s32.totalorder %s17, 0
    %p154 = por %p152, %p153
    %p155 = scmp.le.s32.totalorder 1, %s11
    %p156 = scmp.lt.s32.totalorder %s11, 5
    %p157 = pnand %p155, %p156
    %p158 = pneg %p157
    // Predicated region
    $region9: #{prototypical_forward_batch.1} parent=5 // pred_check
      _
    $region10: #{prototypical_forward_batch.1} parent=5 // pred_check_branch
      %160 = sbr.rel (%p157) target = $region12
    $region11: #{prototypical_forward_batch.1} parent=5 // pred_region
      %s161 = ssub.s32 %s11, 1
      // Predicated region
      $region13: #{prototypical_forward_batch.1} parent=11 // pred_check
        %p162 = pneg %p58
      $region14: #{prototypical_forward_batch.1} parent=11 // pred_check_branch
        %164 = sbr.rel (%p162) target = $region16
      $region15: #{prototypical_forward_batch.1} parent=11 // pred_region
        _
      $region16: #{prototypical_forward_batch.1} parent=11 // pred_fallthru
        _
      // Predicated region
      $region17: #{prototypical_forward_batch.1} parent=11 // pred_check
        %p165 = pneg %p79
      $region18: #{prototypical_forward_batch.1} parent=11 // pred_check_branch
        %167 = sbr.rel (%p165) target = $region20
      $region19: #{prototypical_forward_batch.1} parent=11 // pred_region
        _
      $region20: #{prototypical_forward_batch.1} parent=11 // pred_fallthru
        _
      // Predicated region
      $region21: #{prototypical_forward_batch.1} parent=11 // pred_check
        %p168 = pneg %p100
      $region22: #{prototypical_forward_batch.1} parent=11 // pred_check_branch
        %170 = sbr.rel (%p168) target = $region24
      $region23: #{prototypical_forward_batch.1} parent=11 // pred_region
        _
      $region24: #{prototypical_forward_batch.1} parent=11 // pred_fallthru
        _
      // Predicated region
      $region25: #{prototypical_forward_batch.1} parent=11 // pred_check
        %p171 = pneg %p121
      $region26: #{prototypical_forward_batch.1} parent=11 // pred_check_branch
        %173 = sbr.rel (%p171) target = $region28
      $region27: #{prototypical_forward_batch.1} parent=11 // pred_region
        _
      $region28: #{prototypical_forward_batch.1} parent=11 // pred_fallthru
        _
    $region12: #{prototypical_forward_batch.1} parent=5 // pred_fallthru
      _
    %p174 = scmp.lt.s32.totalorder %s11, 4
    // Predicated region
    $region29: #{prototypical_forward_batch.1} parent=5 // pred_check
      %p175 = pneg %p174
    $region30: #{prototypical_forward_batch.1} parent=5 // pred_check_branch
      %177 = sbr.rel (%p175) target = $region32
    $region31: #{prototypical_forward_batch.1} parent=5 // pred_region
      // Predicated region
      $region33: #{prototypical_forward_batch.1} parent=31 // pred_check
        %p178 = pneg %p31
      $region34: #{prototypical_forward_batch.1} parent=31 // pred_check_branch
        %180 = sbr.rel (%p178) target = $region36
      $region35: #{prototypical_forward_batch.1} parent=31 // pred_region
        %p181 = scmp.lt.s32.totalorder %s11, 3
        %s182 = scalar_select %p181, %s11, 3
        %s183 = smul.addr %s182, 40
        %s184 = smul.addr %s183, 8
        %s185 = scalar_lea.vmem %s0, %s184
      $region36: #{prototypical_forward_batch.1} parent=31 // pred_fallthru
        _
    $region32: #{prototypical_forward_batch.1} parent=5 // pred_fallthru
      _
    %p186 = scmp.le.s32.totalorder 1, %s11
    %p187 = scmp.lt.s32.totalorder %s11, 5
    %p188 = pnand %p186, %p187
    %p189 = pneg %p188
    // Predicated region
    $region37: #{prototypical_forward_batch.1} parent=5 // pred_check
      _
    $region38: #{prototypical_forward_batch.1} parent=5 // pred_check_branch
      %191 = sbr.rel (%p188) target = $region40
    $region39: #{prototypical_forward_batch.1} parent=5 // pred_region
      %s192 = ssub.s32 %s11, 1
      %p193 = scmp.lt.s32.totalorder %s16, 3
      %s194 = scalar_select %p193, %s16, 3
      %s195 = smul.addr %s194, 40
      %s196 = smul.addr %s195, 8
      %s197 = scalar_lea.vmem %s0, %s196
      %p198 = pneg %p37
      %p199 = pneg %p34
      %p200 = pneg %p58
      %p201 = pneg %p55
      %p202 = pneg %p79
      %p203 = pneg %p76
      %p204 = pneg %p100
      %p205 = pneg %p97
      %p206 = pneg %p121
      %p207 = pneg %p118
      %p208 = pneg %p147
      %p209 = pneg %p144
      %p210 = scmp.lt.s32.totalorder %s16, 3
      %s211 = scalar_select %p210, %s16, 3
      %s212 = smul.addr %s211, 8
      %s213 = scalar_lea.vmem %s5, %s212
      %p214 = scmp.lt.s32.totalorder %s16, 3
      %s215 = scalar_select %p214, %s16, 3
      %s216 = smul.addr %s215, 40
      %s217 = smul.addr %s216, 8
      %s218 = scalar_lea.vmem %s0, %s217
      %p219 = scmp.lt.s32.totalorder %s16, 3
      %s220 = scalar_select %p219, %s16, 3
      %s221 = smul.addr %s220, 8
      %s222 = scalar_lea.vmem %s5, %s221
      %v223 = vld [vmem:[%s1] sm:$0xff]
      %v224 = vld [vmem:[%s218] sm:$0xff]
      %v225 = vld [vmem:[%s218 + $0x8] sm:$0xff]
      %v226 = vld [vmem:[%s218 + $0x10] sm:$0xff]
      %v227 = vld [vmem:[%s218 + $0x18] sm:$0xff]
      %v228 = vld [vmem:[%s218 + $0x20] sm:$0xff]
      %v229 = vld [vmem:[%s218 + $0x28] sm:$0xff]
      %v230 = vld [vmem:[%s218 + $0x30] sm:$0xff]
      %v231 = vld [vmem:[%s218 + $0x38] sm:$0xff]
      %v232 = vld [vmem:[%s218 + $0x40] sm:$0xff]
      %v233 = vld [vmem:[%s218 + $0x48] sm:$0xff]
      %v234 = vld [vmem:[%s218 + $0x50] sm:$0xff]
      %v235 = vld [vmem:[%s218 + $0x58] sm:$0xff]
      %v236 = vld [vmem:[%s218 + $0x60] sm:$0xff]
      %v237 = vld [vmem:[%s218 + $0x68] sm:$0xff]
      %v238 = vld [vmem:[%s218 + $0x70] sm:$0xff]
      %v239 = vld [vmem:[%s218 + $0x78] sm:$0xff]
      %v240 = vld [vmem:[%s218 + $0x80] sm:$0xff]
      %v241 = vld [vmem:[%s218 + $0x88] sm:$0xff]
      %v242 = vld [vmem:[%s218 + $0x90] sm:$0xff]
      %v243 = vld [vmem:[%s218 + $0x98] sm:$0xff]
      %v244 = vld [vmem:[%s218 + $0xa0] sm:$0xff]
      %v245 = vld [vmem:[%s218 + $0xa8] sm:$0xff]
      %v246 = vld [vmem:[%s218 + $0xb0] sm:$0xff]
      %v247 = vld [vmem:[%s218 + $0xb8] sm:$0xff]
      %v248 = vld [vmem:[%s218 + $0xc0] sm:$0xff]
      %v249 = vld [vmem:[%s218 + $0xc8] sm:$0xff]
      %v250 = vld [vmem:[%s218 + $0xd0] sm:$0xff]
      %v251 = vld [vmem:[%s218 + $0xd8] sm:$0xff]
      %v252 = vld [vmem:[%s218 + $0xe0] sm:$0xff]
      %v253 = vld [vmem:[%s218 + $0xe8] sm:$0xff]
      %v254 = vld [vmem:[%s218 + $0xf0] sm:$0xff]
      %v255 = vld [vmem:[%s218 + $0xf8] sm:$0xff]
      %v256 = vld [vmem:[%s218 + $0x100] sm:$0xff]
      %v257 = vld [vmem:[%s218 + $0x108] sm:$0xff]
      %v258 = vld [vmem:[%s218 + $0x110] sm:$0xff]
      %v259 = vld [vmem:[%s218 + $0x118] sm:$0xff]
      %v260 = vld [vmem:[%s218 + $0x120] sm:$0xff]
      %v261 = vld [vmem:[%s218 + $0x128] sm:$0xff]
      %v262 = vld [vmem:[%s218 + $0x130] sm:$0xff]
      %v263 = vld [vmem:[%s218 + $0x138] sm:$0xff]
      %vm264 = vcmask 523264
      %v266 = vsel %vm264, %v223, 0
      %268 = vmatprep.subr.mxu0 %v225
      %269 = vmatpush1.msra.mxu0 %v224
      %270 = vmatprep.subr.mxu0 %v230
      %271 = vmatpush1.msra.mxu0 %v229
      %272 = vmatprep.subr.mxu0 %v235
      %273 = vmatpush1.msra.mxu0 %v234
      %274 = vmatprep.subr.mxu0 %v240
      %275 = vmatpush1.msra.mxu0 %v239
      %276 = vmatprep.subr.mxu0 %v245
      %277 = vmatpush1.msra.mxu0 %v244
      %278 = vmatprep.subr.mxu0 %v250
      %279 = vmatpush1.msra.mxu0 %v249
      %280 = vmatprep.subr.mxu0 %v255
      %281 = vmatpush1.msra.mxu0 %v254
      %282 = vmatprep.subr.mxu0 %v260
      %283 = vmatpush1.msra.mxu0 %v259
      %284 = vmatprep.subr.mxu0 0.0
      %285 = vmatpush1.msra.mxu0 0.0
      %286 = vmatprep.subr.mxu0 0.0
      %287 = vmatpush1.msra.mxu0 0.0
      %288 = vmatprep.subr.mxu0 0.0
      %289 = vmatpush1.msra.mxu0 0.0
      %290 = vmatprep.subr.mxu0 0.0
      %291 = vmatpush1.msra.mxu0 0.0
      %292 = vmatprep.subr.mxu0 0.0
      %293 = vmatpush1.msra.mxu0 0.0
      %294 = vmatprep.subr.mxu0 0.0
      %295 = vmatpush1.msra.mxu0 0.0
      %296 = vmatprep.subr.mxu0 0.0
      %297 = vmatpush1.msra.mxu0 0.0
      %298 = vmatprep.subr.mxu0 0.0
      %299 = vmatpush1.msra.mxu0 0.0
      %300 = vmatprep.subr.mxu0 0.0
      %301 = vmatpush1.msra.mxu0 0.0
      %302 = vmatprep.subr.mxu0 0.0
      %303 = vmatpush1.msra.mxu0 0.0
      %304 = vmatprep.subr.mxu0 0.0
      %305 = vmatpush1.msra.mxu0 0.0
      %306 = vmatprep.subr.mxu0 0.0
      %307 = vmatpush1.msra.mxu0 0.0
      %308 = vmatprep.subr.mxu0 0.0
      %309 = vmatpush1.msra.mxu0 0.0
      %310 = vmatprep.subr.mxu0 0.0
      %311 = vmatpush1.msra.mxu0 0.0
      %312 = vmatprep.subr.mxu0 0.0
      %313 = vmatpush1.msra.mxu0 0.0
      %314 = vmatprep.subr.mxu0 0.0
      %315 = vmatpush1.msra.mxu0 0.0
      %316 = vmatprep.subr.mxu0 0.0
      %317 = vmatpush1.msra.mxu0 0.0
      %318 = vmatprep.subr.mxu0 0.0
      %319 = vmatpush1.msra.mxu0 0.0
      %320 = vmatprep.subr.mxu0 0.0
      %321 = vmatpush1.msra.mxu0 0.0
      %322 = vmatprep.subr.mxu0 0.0
      %323 = vmatpush1.msra.mxu0 0.0
      %324 = vmatprep.subr.mxu0 0.0
      %325 = vmatpush1.msra.mxu0 0.0
      %326 = vmatprep.subr.mxu0 0.0
      %327 = vmatpush1.msra.mxu0 0.0
      %328 = vmatprep.subr.mxu0 0.0
      %329 = vmatpush1.msra.mxu0 0.0
      %330 = vmatprep.subr.mxu0 0.0
      %331 = vmatpush1.msra.mxu0 0.0
      %332 = vmatprep.mubr.f32.mxu0 0.0
      %333 = vmatmul.mubr.f32.gmra.mrb[0].mxu0 %v266
      %v334 = vpop.f32.mrb[0].mxu0
      %v335 = vadd.f32 0.0, %v334
      %v336 = vpop.f32.mrb[0].mxu0
      %v337 = vadd.f32 0.0, %v336
      %338 = vdwg.mxu0
      %339 = vmatprep.subr.mxu0 %v227
      %340 = vmatpush1.msra.mxu0 %v226
      %341 = vmatprep.subr.mxu0 %v232
      %342 = vmatpush1.msra.mxu0 %v231
      %343 = vmatprep.subr.mxu0 %v237
      %344 = vmatpush1.msra.mxu0 %v236
      %345 = vmatprep.subr.mxu0 %v242
      %346 = vmatpush1.msra.mxu0 %v241
      %347 = vmatprep.subr.mxu0 %v247
      %348 = vmatpush1.msra.mxu0 %v246
      %349 = vmatprep.subr.mxu0 %v252
      %350 = vmatpush1.msra.mxu0 %v251
      %351 = vmatprep.subr.mxu0 %v257
      %352 = vmatpush1.msra.mxu0 %v256
      %353 = vmatprep.subr.mxu0 %v262
      %354 = vmatpush1.msra.mxu0 %v261
      %355 = vmatprep.subr.mxu0 0.0
      %356 = vmatpush1.msra.mxu0 0.0
      %357 = vmatprep.subr.mxu0 0.0
      %358 = vmatpush1.msra.mxu0 0.0
      %359 = vmatprep.subr.mxu0 0.0
      %360 = vmatpush1.msra.mxu0 0.0
      %361 = vmatprep.subr.mxu0 0.0
      %362 = vmatpush1.msra.mxu0 0.0
      %363 = vmatprep.subr.mxu0 0.0
      %364 = vmatpush1.msra.mxu0 0.0
      %365 = vmatprep.subr.mxu0 0.0
      %366 = vmatpush1.msra.mxu0 0.0
      %367 = vmatprep.subr.mxu0 0.0
      %368 = vmatpush1.msra.mxu0 0.0
      %369 = vmatprep.subr.mxu0 0.0
      %370 = vmatpush1.msra.mxu0 0.0
      %371 = vmatprep.subr.mxu0 0.0
      %372 = vmatpush1.msra.mxu0 0.0
      %373 = vmatprep.subr.mxu0 0.0
      %374 = vmatpush1.msra.mxu0 0.0
      %375 = vmatprep.subr.mxu0 0.0
      %376 = vmatpush1.msra.mxu0 0.0
      %377 = vmatprep.subr.mxu0 0.0
      %378 = vmatpush1.msra.mxu0 0.0
      %379 = vmatprep.subr.mxu0 0.0
      %380 = vmatpush1.msra.mxu0 0.0
      %381 = vmatprep.subr.mxu0 0.0
      %382 = vmatpush1.msra.mxu0 0.0
      %383 = vmatprep.subr.mxu0 0.0
      %384 = vmatpush1.msra.mxu0 0.0
      %385 = vmatprep.subr.mxu0 0.0
      %386 = vmatpush1.msra.mxu0 0.0
      %387 = vmatprep.subr.mxu0 0.0
      %388 = vmatpush1.msra.mxu0 0.0
      %389 = vmatprep.subr.mxu0 0.0
      %390 = vmatpush1.msra.mxu0 0.0
      %391 = vmatprep.subr.mxu0 0.0
      %392 = vmatpush1.msra.mxu0 0.0
      %393 = vmatprep.subr.mxu0 0.0
      %394 = vmatpush1.msra.mxu0 0.0
      %395 = vmatprep.subr.mxu0 0.0
      %396 = vmatpush1.msra.mxu0 0.0
      %397 = vmatprep.subr.mxu0 0.0
      %398 = vmatpush1.msra.mxu0 0.0
      %399 = vmatprep.subr.mxu0 0.0
      %400 = vmatpush1.msra.mxu0 0.0
      %401 = vmatprep.subr.mxu0 0.0
      %402 = vmatpush1.msra.mxu0 0.0
      %403 = vmatprep.mubr.f32.mxu0 0.0
      %404 = vmatmul.mubr.f32.gmra.mrb[0].mxu0 %v266
      %v405 = vpop.f32.mrb[0].mxu0
      %v406 = vadd.f32 0.0, %v405
      %v407 = vpop.f32.mrb[0].mxu0
      %v408 = vadd.f32 0.0, %v407
      %409 = vdwg.mxu0
      %410 = vmatprep.subr.mxu0 0.0
      %411 = vmatpush1.msra.mxu0 %v228
      %412 = vmatprep.subr.mxu0 0.0
      %413 = vmatpush1.msra.mxu0 %v233
      %414 = vmatprep.subr.mxu0 0.0
      %415 = vmatpush1.msra.mxu0 %v238
      %416 = vmatprep.subr.mxu0 0.0
      %417 = vmatpush1.msra.mxu0 %v243
      %418 = vmatprep.subr.mxu0 0.0
      %419 = vmatpush1.msra.mxu0 %v248
      %420 = vmatprep.subr.mxu0 0.0
      %421 = vmatpush1.msra.mxu0 %v253
      %422 = vmatprep.subr.mxu0 0.0
      %423 = vmatpush1.msra.mxu0 %v258
      %424 = vmatprep.subr.mxu0 0.0
      %425 = vmatpush1.msra.mxu0 %v263
      %426 = vmatprep.subr.mxu0 0.0
      %427 = vmatpush1.msra.mxu0 0.0
      %428 = vmatprep.subr.mxu0 0.0
      %429 = vmatpush1.msra.mxu0 0.0
      %430 = vmatprep.subr.mxu0 0.0
      %431 = vmatpush1.msra.mxu0 0.0
      %432 = vmatprep.subr.mxu0 0.0
      %433 = vmatpush1.msra.mxu0 0.0
      %434 = vmatprep.subr.mxu0 0.0
      %435 = vmatpush1.msra.mxu0 0.0
      %436 = vmatprep.subr.mxu0 0.0
      %437 = vmatpush1.msra.mxu0 0.0
      %438 = vmatprep.subr.mxu0 0.0
      %439 = vmatpush1.msra.mxu0 0.0
      %440 = vmatprep.subr.mxu0 0.0
      %441 = vmatpush1.msra.mxu0 0.0
      %442 = vmatprep.subr.mxu0 0.0
      %443 = vmatpush1.msra.mxu0 0.0
      %444 = vmatprep.subr.mxu0 0.0
      %445 = vmatpush1.msra.mxu0 0.0
      %446 = vmatprep.subr.mxu0 0.0
      %447 = vmatpush1.msra.mxu0 0.0
      %448 = vmatprep.subr.mxu0 0.0
      %449 = vmatpush1.msra.mxu0 0.0
      %450 = vmatprep.subr.mxu0 0.0
      %451 = vmatpush1.msra.mxu0 0.0
      %452 = vmatprep.subr.mxu0 0.0
      %453 = vmatpush1.msra.mxu0 0.0
      %454 = vmatprep.subr.mxu0 0.0
      %455 = vmatpush1.msra.mxu0 0.0
      %456 = vmatprep.subr.mxu0 0.0
      %457 = vmatpush1.msra.mxu0 0.0
      %458 = vmatprep.subr.mxu0 0.0
      %459 = vmatpush1.msra.mxu0 0.0
      %460 = vmatprep.subr.mxu0 0.0
      %461 = vmatpush1.msra.mxu0 0.0
      %462 = vmatprep.subr.mxu0 0.0
      %463 = vmatpush1.msra.mxu0 0.0
      %464 = vmatprep.subr.mxu0 0.0
      %465 = vmatpush1.msra.mxu0 0.0
      %466 = vmatprep.subr.mxu0 0.0
      %467 = vmatpush1.msra.mxu0 0.0
      %468 = vmatprep.subr.mxu0 0.0
      %469 = vmatpush1.msra.mxu0 0.0
      %470 = vmatprep.subr.mxu0 0.0
      %471 = vmatpush1.msra.mxu0 0.0
      %472 = vmatprep.subr.mxu0 0.0
      %473 = vmatpush1.msra.mxu0 0.0
      %474 = vmatprep.mubr.f32.mxu0 0.0
      %475 = vmatmul.mubr.f32.gmra.mrb[0].mxu0 %v266
      %v476 = vpop.f32.mrb[0].mxu0
      %v477 = vadd.f32 0.0, %v476
      %v478 = vpop.f32.mrb[0].mxu0
      %479 = vdwg.mxu0
      %v480 = vmax.f32 %v335, 0.0
      %v481 = vmax.f32 %v337, 0.0
      %v482 = vmax.f32 %v406, 0.0
      %v483 = vmax.f32 %v408, 0.0
      %v484 = vmax.f32 %v477, 0.0
      %v485 = vld [vmem:[%s2] sm:$0xff]
      %v486 = vld [vmem:[%s2 + $0x8] sm:$0xff]
      %v487 = vld [vmem:[%s2 + $0x10] sm:$0xff]
      %v488 = vld [vmem:[%s2 + $0x18] sm:$0xff]
      %v489 = vld [vmem:[%s2 + $0x20] sm:$0xff]
      %v490 = vld [vmem:[%s2 + $0x28] sm:$0x7]
      %v491 = vld [vmem:[%s2 + $0x30] sm:$0x7]
      %v492 = vld [vmem:[%s2 + $0x38] sm:$0x7]
      %v493 = vld [vmem:[%s2 + $0x40] sm:$0x7]
      %v494 = vld [vmem:[%s2 + $0x48] sm:$0x7]
      %495 = vmatprep.subr.mxu0 %v481
      %496 = vmatpush1.xpose.msra.mxu0 %v480
      %497 = vmatprep.subr.mxu0 0.0
      %498 = vmatpush1.xpose.msra.mxu0 0.0
      %499 = vmatprep.subr.mxu0 0.0
      %500 = vmatpush1.xpose.msra.mxu0 0.0
      %501 = vmatprep.subr.mxu0 0.0
      %502 = vmatpush1.xpose.msra.mxu0 0.0
      %503 = vmatprep.subr.mxu0 0.0
      %504 = vmatpush1.xpose.msra.mxu0 0.0
      %505 = vmatprep.subr.mxu0 0.0
      %506 = vmatpush1.xpose.msra.mxu0 0.0
      %507 = vmatprep.subr.mxu0 0.0
      %508 = vmatpush1.xpose.msra.mxu0 0.0
      %509 = vmatprep.subr.mxu0 0.0
      %510 = vmatpush1.xpose.msra.mxu0 0.0
      %511 = vmatprep.subr.mxu0 0.0
      %512 = vmatpush1.xpose.msra.mxu0 0.0
      %513 = vmatprep.subr.mxu0 0.0
      %514 = vmatpush1.xpose.msra.mxu0 0.0
      %515 = vmatprep.subr.mxu0 0.0
      %516 = vmatpush1.xpose.msra.mxu0 0.0
      %517 = vmatprep.subr.mxu0 0.0
      %518 = vmatpush1.xpose.msra.mxu0 0.0
      %519 = vmatprep.subr.mxu0 0.0
      %520 = vmatpush1.xpose.msra.mxu0 0.0
      %521 = vmatprep.subr.mxu0 0.0
      %522 = vmatpush1.xpose.msra.mxu0 0.0
      %523 = vmatprep.subr.mxu0 0.0
      %524 = vmatpush1.xpose.msra.mxu0 0.0
      %525 = vmatprep.subr.mxu0 0.0
      %526 = vmatpush1.xpose.msra.mxu0 0.0
      %527 = vmatprep.subr.mxu0 0.0
      %528 = vmatpush1.xpose.msra.mxu0 0.0
      %529 = vmatprep.subr.mxu0 0.0
      %530 = vmatpush1.xpose.msra.mxu0 0.0
      %531 = vmatprep.subr.mxu0 0.0
      %532 = vmatpush1.xpose.msra.mxu0 0.0
      %533 = vmatprep.subr.mxu0 0.0
      %534 = vmatpush1.xpose.msra.mxu0 0.0
      %535 = vmatprep.subr.mxu0 0.0
      %536 = vmatpush1.xpose.msra.mxu0 0.0
      %537 = vmatprep.subr.mxu0 0.0
      %538 = vmatpush1.xpose.msra.mxu0 0.0
      %539 = vmatprep.subr.mxu0 0.0
      %540 = vmatpush1.xpose.msra.mxu0 0.0
      %541 = vmatprep.subr.mxu0 0.0
      %542 = vmatpush1.xpose.msra.mxu0 0.0
      %543 = vmatprep.subr.mxu0 0.0
      %544 = vmatpush1.xpose.msra.mxu0 0.0
      %545 = vmatprep.subr.mxu0 0.0
      %546 = vmatpush1.xpose.msra.mxu0 0.0
      %547 = vmatprep.subr.mxu0 0.0
      %548 = vmatpush1.xpose.msra.mxu0 0.0
      %549 = vmatprep.subr.mxu0 0.0
      %550 = vmatpush1.xpose.msra.mxu0 0.0
      %551 = vmatprep.subr.mxu0 0.0
      %552 = vmatpush1.xpose.msra.mxu0 0.0
      %553 = vmatprep.subr.mxu0 0.0
      %554 = vmatpush1.xpose.msra.mxu0 0.0
      %555 = vmatprep.subr.mxu0 0.0
      %556 = vmatpush1.xpose.msra.mxu0 0.0
      %557 = vmatprep.subr.mxu0 0.0
      %558 = vmatpush1.xpose.msra.mxu0 0.0
      %559 = vmatprep.mubr.f32.mxu0 %v486
      %560 = vmatmul.mubr.f32.gmra.mrb[0].mxu0 %v485
      %v561 = vpop.f32.mrb[0].mxu0
      %v562 = vadd.f32 0.0, %v561
      %v563 = vpop.f32.mrb[0].mxu0
      %564 = vmatprep.mubr.f32.mxu0 %v491
      %565 = vmatmul.mubr.f32.gmra.mrb[0].mxu0 %v490
      %v566 = vpop.f32.mrb[0].mxu0
      %v567 = vadd.f32 0.0, %v566
      %v568 = vpop.f32.mrb[0].mxu0
      %569 = vdwg.mxu0
      %570 = vmatprep.subr.mxu0 %v483
      %571 = vmatpush1.xpose.msra.mxu0 %v482
      %572 = vmatprep.subr.mxu0 0.0
      %573 = vmatpush1.xpose.msra.mxu0 0.0
      %574 = vmatprep.subr.mxu0 0.0
      %575 = vmatpush1.xpose.msra.mxu0 0.0
      %576 = vmatprep.subr.mxu0 0.0
      %577 = vmatpush1.xpose.msra.mxu0 0.0
      %578 = vmatprep.subr.mxu0 0.0
      %579 = vmatpush1.xpose.msra.mxu0 0.0
      %580 = vmatprep.subr.mxu0 0.0
      %581 = vmatpush1.xpose.msra.mxu0 0.0
      %582 = vmatprep.subr.mxu0 0.0
      %583 = vmatpush1.xpose.msra.mxu0 0.0
      %584 = vmatprep.subr.mxu0 0.0
      %585 = vmatpush1.xpose.msra.mxu0 0.0
      %586 = vmatprep.subr.mxu0 0.0
      %587 = vmatpush1.xpose.msra.mxu0 0.0
      %588 = vmatprep.subr.mxu0 0.0
      %589 = vmatpush1.xpose.msra.mxu0 0.0
      %590 = vmatprep.subr.mxu0 0.0
      %591 = vmatpush1.xpose.msra.mxu0 0.0
      %592 = vmatprep.subr.mxu0 0.0
      %593 = vmatpush1.xpose.msra.mxu0 0.0
      %594 = vmatprep.subr.mxu0 0.0
      %595 = vmatpush1.xpose.msra.mxu0 0.0
      %596 = vmatprep.subr.mxu0 0.0
      %597 = vmatpush1.xpose.msra.mxu0 0.0
      %598 = vmatprep.subr.mxu0 0.0
      %599 = vmatpush1.xpose.msra.mxu0 0.0
      %600 = vmatprep.subr.mxu0 0.0
      %601 = vmatpush1.xpose.msra.mxu0 0.0
      %602 = vmatprep.subr.mxu0 0.0
      %603 = vmatpush1.xpose.msra.mxu0 0.0
      %604 = vmatprep.subr.mxu0 0.0
      %605 = vmatpush1.xpose.msra.mxu0 0.0
      %606 = vmatprep.subr.mxu0 0.0
      %607 = vmatpush1.xpose.msra.mxu0 0.0
      %608 = vmatprep.subr.mxu0 0.0
      %609 = vmatpush1.xpose.msra.mxu0 0.0
      %610 = vmatprep.subr.mxu0 0.0
      %611 = vmatpush1.xpose.msra.mxu0 0.0
      %612 = vmatprep.subr.mxu0 0.0
      %613 = vmatpush1.xpose.msra.mxu0 0.0
      %614 = vmatprep.subr.mxu0 0.0
      %615 = vmatpush1.xpose.msra.mxu0 0.0
      %616 = vmatprep.subr.mxu0 0.0
      %617 = vmatpush1.xpose.msra.mxu0 0.0
      %618 = vmatprep.subr.mxu0 0.0
      %619 = vmatpush1.xpose.msra.mxu0 0.0
      %620 = vmatprep.subr.mxu0 0.0
      %621 = vmatpush1.xpose.msra.mxu0 0.0
      %622 = vmatprep.subr.mxu0 0.0
      %623 = vmatpush1.xpose.msra.mxu0 0.0
      %624 = vmatprep.subr.mxu0 0.0
      %625 = vmatpush1.xpose.msra.mxu0 0.0
      %626 = vmatprep.subr.mxu0 0.0
      %627 = vmatpush1.xpose.msra.mxu0 0.0
      %628 = vmatprep.subr.mxu0 0.0
      %629 = vmatpush1.xpose.msra.mxu0 0.0
      %630 = vmatprep.subr.mxu0 0.0
      %631 = vmatpush1.xpose.msra.mxu0 0.0
      %632 = vmatprep.subr.mxu0 0.0
      %633 = vmatpush1.xpose.msra.mxu0 0.0
      %634 = vmatprep.mubr.f32.mxu0 %v488
      %635 = vmatmul.mubr.f32.gmra.mrb[0].mxu0 %v487
      %v636 = vpop.f32.mrb[0].mxu0
      %v637 = vadd.f32 %v562, %v636
      %v638 = vpop.f32.mrb[0].mxu0
      %639 = vmatprep.mubr.f32.mxu0 %v493
      %640 = vmatmul.mubr.f32.gmra.mrb[0].mxu0 %v492
      %v641 = vpop.f32.mrb[0].mxu0
      %v642 = vadd.f32 %v567, %v641
      %v643 = vpop.f32.mrb[0].mxu0
      %644 = vdwg.mxu0
      %645 = vmatprep.subr.mxu0 0.0
      %646 = vmatpush1.xpose.msra.mxu0 %v484
      %647 = vmatprep.subr.mxu0 0.0
      %648 = vmatpush1.xpose.msra.mxu0 0.0
      %649 = vmatprep.subr.mxu0 0.0
      %650 = vmatpush1.xpose.msra.mxu0 0.0
      %651 = vmatprep.subr.mxu0 0.0
      %652 = vmatpush1.xpose.msra.mxu0 0.0
      %653 = vmatprep.subr.mxu0 0.0
      %654 = vmatpush1.xpose.msra.mxu0 0.0
      %655 = vmatprep.subr.mxu0 0.0
      %656 = vmatpush1.xpose.msra.mxu0 0.0
      %657 = vmatprep.subr.mxu0 0.0
      %658 = vmatpush1.xpose.msra.mxu0 0.0
      %659 = vmatprep.subr.mxu0 0.0
      %660 = vmatpush1.xpose.msra.mxu0 0.0
      %661 = vmatprep.subr.mxu0 0.0
      %662 = vmatpush1.xpose.msra.mxu0 0.0
      %663 = vmatprep.subr.mxu0 0.0
      %664 = vmatpush1.xpose.msra.mxu0 0.0
      %665 = vmatprep.subr.mxu0 0.0
      %666 = vmatpush1.xpose.msra.mxu0 0.0
      %667 = vmatprep.subr.mxu0 0.0
      %668 = vmatpush1.xpose.msra.mxu0 0.0
      %669 = vmatprep.subr.mxu0 0.0
      %670 = vmatpush1.xpose.msra.mxu0 0.0
      %671 = vmatprep.subr.mxu0 0.0
      %672 = vmatpush1.xpose.msra.mxu0 0.0
      %673 = vmatprep.subr.mxu0 0.0
      %674 = vmatpush1.xpose.msra.mxu0 0.0
      %675 = vmatprep.subr.mxu0 0.0
      %676 = vmatpush1.xpose.msra.mxu0 0.0
      %677 = vmatprep.subr.mxu0 0.0
      %678 = vmatpush1.xpose.msra.mxu0 0.0
      %679 = vmatprep.subr.mxu0 0.0
      %680 = vmatpush1.xpose.msra.mxu0 0.0
      %681 = vmatprep.subr.mxu0 0.0
      %682 = vmatpush1.xpose.msra.mxu0 0.0
      %683 = vmatprep.subr.mxu0 0.0
      %684 = vmatpush1.xpose.msra.mxu0 0.0
      %685 = vmatprep.subr.mxu0 0.0
      %686 = vmatpush1.xpose.msra.mxu0 0.0
      %687 = vmatprep.subr.mxu0 0.0
      %688 = vmatpush1.xpose.msra.mxu0 0.0
      %689 = vmatprep.subr.mxu0 0.0
      %690 = vmatpush1.xpose.msra.mxu0 0.0
      %691 = vmatprep.subr.mxu0 0.0
      %692 = vmatpush1.xpose.msra.mxu0 0.0
      %693 = vmatprep.subr.mxu0 0.0
      %694 = vmatpush1.xpose.msra.mxu0 0.0
      %695 = vmatprep.subr.mxu0 0.0
      %696 = vmatpush1.xpose.msra.mxu0 0.0
      %697 = vmatprep.subr.mxu0 0.0
      %698 = vmatpush1.xpose.msra.mxu0 0.0
      %699 = vmatprep.subr.mxu0 0.0
      %700 = vmatpush1.xpose.msra.mxu0 0.0
      %701 = vmatprep.subr.mxu0 0.0
      %702 = vmatpush1.xpose.msra.mxu0 0.0
      %703 = vmatprep.subr.mxu0 0.0
      %704 = vmatpush1.xpose.msra.mxu0 0.0
      %705 = vmatprep.subr.mxu0 0.0
      %706 = vmatpush1.xpose.msra.mxu0 0.0
      %707 = vmatprep.subr.mxu0 0.0
      %708 = vmatpush1.xpose.msra.mxu0 0.0
      %709 = vmatprep.mubr.f32.mxu0 0.0
      %710 = vmatmul.mubr.f32.gmra.mrb[0].mxu0 %v489
      %v711 = vpop.f32.mrb[0].mxu0
      %v712 = vadd.f32 %v637, %v711
      %v713 = vpop.f32.mrb[0].mxu0
      %714 = vmatprep.mubr.f32.mxu0 0.0
      %715 = vmatmul.mubr.f32.gmra.mrb[0].mxu0 %v494
      %v716 = vpop.f32.mrb[0].mxu0
      %v717 = vadd.f32 %v642, %v716
      %v718 = vpop.f32.mrb[0].mxu0
      %719 = vdwg.mxu0
      %v720 = vld [vmem:[%s3] sm:$0xff]
      %v721 = vld [vmem:[%s4] sm:$0x1]
      %v723 = vlaneseq
      %v724 = vshrl.u32 %v723, 7
      %v725 = vsub.s32 0, %v724
      %v726 = vrot.slane %v721, %v725
      %vm728 = vcmask 64512
      %v730 = vsel %vm728, %v712, 0
      %v733 = vsel %vm728, %v717, 0
      %735 = vmatprep.subr.mxu0 0.0
      %736 = vmatpush1.msra.mxu0 %v720
      %737 = vmatprep.subr.mxu0 0.0
      %738 = vmatpush1.msra.mxu0 0.0
      %739 = vmatprep.subr.mxu0 0.0
      %740 = vmatpush1.msra.mxu0 0.0
      %741 = vmatprep.subr.mxu0 0.0
      %742 = vmatpush1.msra.mxu0 0.0
      %743 = vmatprep.subr.mxu0 0.0
      %744 = vmatpush1.msra.mxu0 0.0
      %745 = vmatprep.subr.mxu0 0.0
      %746 = vmatpush1.msra.mxu0 0.0
      %747 = vmatprep.subr.mxu0 0.0
      %748 = vmatpush1.msra.mxu0 0.0
      %749 = vmatprep.subr.mxu0 0.0
      %750 = vmatpush1.msra.mxu0 0.0
      %751 = vmatprep.subr.mxu0 0.0
      %752 = vmatpush1.msra.mxu0 0.0
      %753 = vmatprep.subr.mxu0 0.0
      %754 = vmatpush1.msra.mxu0 0.0
      %755 = vmatprep.subr.mxu0 0.0
      %756 = vmatpush1.msra.mxu0 0.0
      %757 = vmatprep.subr.mxu0 0.0
      %758 = vmatpush1.msra.mxu0 0.0
      %759 = vmatprep.subr.mxu0 0.0
      %760 = vmatpush1.msra.mxu0 0.0
      %761 = vmatprep.subr.mxu0 0.0
      %762 = vmatpush1.msra.mxu0 0.0
      %763 = vmatprep.subr.mxu0 0.0
      %764 = vmatpush1.msra.mxu0 0.0
      %765 = vmatprep.subr.mxu0 0.0
      %766 = vmatpush1.msra.mxu0 0.0
      %767 = vmatprep.subr.mxu0 0.0
      %768 = vmatpush1.msra.mxu0 0.0
      %769 = vmatprep.subr.mxu0 0.0
      %770 = vmatpush1.msra.mxu0 0.0
      %771 = vmatprep.subr.mxu0 0.0
      %772 = vmatpush1.msra.mxu0 0.0
      %773 = vmatprep.subr.mxu0 0.0
      %774 = vmatpush1.msra.mxu0 0.0
      %775 = vmatprep.subr.mxu0 0.0
      %776 = vmatpush1.msra.mxu0 0.0
      %777 = vmatprep.subr.mxu0 0.0
      %778 = vmatpush1.msra.mxu0 0.0
      %779 = vmatprep.subr.mxu0 0.0
      %780 = vmatpush1.msra.mxu0 0.0
      %781 = vmatprep.subr.mxu0 0.0
      %782 = vmatpush1.msra.mxu0 0.0
      %783 = vmatprep.subr.mxu0 0.0
      %784 = vmatpush1.msra.mxu0 0.0
      %785 = vmatprep.subr.mxu0 0.0
      %786 = vmatpush1.msra.mxu0 0.0
      %787 = vmatprep.subr.mxu0 0.0
      %788 = vmatpush1.msra.mxu0 0.0
      %789 = vmatprep.subr.mxu0 0.0
      %790 = vmatpush1.msra.mxu0 0.0
      %791 = vmatprep.subr.mxu0 0.0
      %792 = vmatpush1.msra.mxu0 0.0
      %793 = vmatprep.subr.mxu0 0.0
      %794 = vmatpush1.msra.mxu0 0.0
      %795 = vmatprep.subr.mxu0 0.0
      %796 = vmatpush1.msra.mxu0 0.0
      %797 = vmatprep.subr.mxu0 0.0
      %798 = vmatpush1.msra.mxu0 0.0
      %799 = vmatprep.mubr.f32.mxu0 0.0
      %800 = vmatmul.mubr.f32.gmra.mrb[0].mxu0 %v730
      %v801 = vpop.f32.mrb[0].mxu0
      %v802 = vadd.f32 %v726, %v801
      %v803 = vpop.f32.mrb[0].mxu0
      %804 = vmatprep.mubr.f32.mxu0 0.0
      %805 = vmatmul.mubr.f32.gmra.mrb[0].mxu0 %v733
      %v806 = vpop.f32.mrb[0].mxu0
      %v807 = vadd.f32 %v726, %v806
      %v808 = vpop.f32.mrb[0].mxu0
      %809 = vdwg.mxu0
      %v810 = vmul.f32 %v802, %v802
      %v811 = vmul.f32 %v807, %v807
      %vm812 = vcmask 261123
      %v813 = vsel %vm812, %v810, 0.0
      %814 = vadd.xlane.f32.xlu0 %v813
      %v815 = vpop.xlane.xlu0 %814
      %vm816 = vcmask 256000
      %v817 = vsel %vm816, %v811, 0.0
      %818 = vadd.xlane.f32.xlu0 %v817
      %v819 = vpop.xlane.xlu0 %818
      %v820 = vsel %vm816, %v810, 0.0
      %821 = vadd.xlane.f32.xlu0 %v820
      %v822 = vpop.xlane.xlu0 %821
      %vm825 = vcmask 1044480
      %v826 = vrot.slane %v802, 3
      %v827 = vrot.slane %v807, 3
      %v828 = vsel %vm825, %v826, %v827
      %vm829 = vcmask 261120
      %v830 = vsel %vm829, %v828, 0
      %v832 = vsel %vm829, %v802, 0
      %834 = vmatprep.subr.mxu0 0.0
      %835 = vmatpush1.xpose.msra.mxu0 %v832
      %836 = vmatprep.subr.mxu0 0.0
      %837 = vmatpush1.xpose.msra.mxu0 0.0
      %838 = vmatprep.subr.mxu0 0.0
      %839 = vmatpush1.xpose.msra.mxu0 0.0
      %840 = vmatprep.subr.mxu0 0.0
      %841 = vmatpush1.xpose.msra.mxu0 0.0
      %842 = vmatprep.subr.mxu0 0.0
      %843 = vmatpush1.xpose.msra.mxu0 0.0
      %844 = vmatprep.subr.mxu0 0.0
      %845 = vmatpush1.xpose.msra.mxu0 0.0
      %846 = vmatprep.subr.mxu0 0.0
      %847 = vmatpush1.xpose.msra.mxu0 0.0
      %848 = vmatprep.subr.mxu0 0.0
      %849 = vmatpush1.xpose.msra.mxu0 0.0
      %850 = vmatprep.subr.mxu0 0.0
      %851 = vmatpush1.xpose.msra.mxu0 0.0
      %852 = vmatprep.subr.mxu0 0.0
      %853 = vmatpush1.xpose.msra.mxu0 0.0
      %854 = vmatprep.subr.mxu0 0.0
      %855 = vmatpush1.xpose.msra.mxu0 0.0
      %856 = vmatprep.subr.mxu0 0.0
      %857 = vmatpush1.xpose.msra.mxu0 0.0
      %858 = vmatprep.subr.mxu0 0.0
      %859 = vmatpush1.xpose.msra.mxu0 0.0
      %860 = vmatprep.subr.mxu0 0.0
      %861 = vmatpush1.xpose.msra.mxu0 0.0
      %862 = vmatprep.subr.mxu0 0.0
      %863 = vmatpush1.xpose.msra.mxu0 0.0
      %864 = vmatprep.subr.mxu0 0.0
      %865 = vmatpush1.xpose.msra.mxu0 0.0
      %866 = vmatprep.subr.mxu0 0.0
      %867 = vmatpush1.xpose.msra.mxu0 0.0
      %868 = vmatprep.subr.mxu0 0.0
      %869 = vmatpush1.xpose.msra.mxu0 0.0
      %870 = vmatprep.subr.mxu0 0.0
      %871 = vmatpush1.xpose.msra.mxu0 0.0
      %872 = vmatprep.subr.mxu0 0.0
      %873 = vmatpush1.xpose.msra.mxu0 0.0
      %874 = vmatprep.subr.mxu0 0.0
      %875 = vmatpush1.xpose.msra.mxu0 0.0
      %876 = vmatprep.subr.mxu0 0.0
      %877 = vmatpush1.xpose.msra.mxu0 0.0
      %878 = vmatprep.subr.mxu0 0.0
      %879 = vmatpush1.xpose.msra.mxu0 0.0
      %880 = vmatprep.subr.mxu0 0.0
      %881 = vmatpush1.xpose.msra.mxu0 0.0
      %882 = vmatprep.subr.mxu0 0.0
      %883 = vmatpush1.xpose.msra.mxu0 0.0
      %884 = vmatprep.subr.mxu0 0.0
      %885 = vmatpush1.xpose.msra.mxu0 0.0
      %886 = vmatprep.subr.mxu0 0.0
      %887 = vmatpush1.xpose.msra.mxu0 0.0
      %888 = vmatprep.subr.mxu0 0.0
      %889 = vmatpush1.xpose.msra.mxu0 0.0
      %890 = vmatprep.subr.mxu0 0.0
      %891 = vmatpush1.xpose.msra.mxu0 0.0
      %892 = vmatprep.subr.mxu0 0.0
      %893 = vmatpush1.xpose.msra.mxu0 0.0
      %894 = vmatprep.subr.mxu0 0.0
      %895 = vmatpush1.xpose.msra.mxu0 0.0
      %896 = vmatprep.subr.mxu0 0.0
      %897 = vmatpush1.xpose.msra.mxu0 0.0
      %898 = vmatprep.mubr.f32.mxu0 0.0
      %899 = vmatmul.mubr.f32.gmra.mrb[0].mxu0 %v830
      %v900 = vpop.f32.mrb[0].mxu0
      %v901 = vadd.f32 0.0, %v900
      %v902 = vpop.f32.mrb[0].mxu0
      %903 = vdwg.mxu0
      %v905 = vlaneseq
      %v906 = vand.u32 %v905, 127
      %v907 = vlaneseq
      %v908 = vshrl.u32 %v907, 7
      %v909 = vsub.s32 %v906, %v908
      %v910 = vrot.slane %v822, %v909
      %vm911 = vcmask 1045509
      %v912 = vsel %vm911, %v910, %v910
      %vm913 = vcmask 1046534
      %v914 = vsel %vm913, %v910, %v912
      %vm915 = vcmask 1047559
      %v916 = vsel %vm915, %v910, %v914
      %vm917 = vcmask 1042434
      %v918 = vsel %vm917, %v910, %v910
      %v921 = vadd.f32 %v815, %v916
      %v922 = vadd.f32 %v819, %v918
      %v923 = vmul.f32 %v901, 2.0
      %v925 = vrot.slane %v923, 5
      %v927 = vsub.f32 %v921, %v925
      %v928 = vsub.f32 %v922, %v925
      %v929 = vmax.f32 %v927, 0.0
      %v930 = vmax.f32 %v928, 0.0
      %v931 = vrsqrt.pop %v929
      %v932 = vmul.f32 %v929, %v931
      %vm933 = vcmp.eq.f32.partialorder %v929, inf
      %v934 = vsel %vm933, %v929, %v932
      %vm935 = vcmp.eq.f32.partialorder %v929, 0.0
      %v936 = vand.u32 %v929, 2147483648
      %v937 = vsel %vm935, %v936, %v934
      %v938 = vrsqrt.pop %v930
      %v939 = vmul.f32 %v930, %v938
      %vm940 = vcmp.eq.f32.partialorder %v930, inf
      %v941 = vsel %vm940, %v930, %v939
      %vm942 = vcmp.eq.f32.partialorder %v930, 0.0
      %v943 = vand.u32 %v930, 2147483648
      %v944 = vsel %vm942, %v943, %v941
      %v945 = vsub.f32 0.0, %v937
      %v946 = vsub.f32 0.0, %v944
      %v947 = vlaneseq
      %v948 = vshrl.u32 %v947, 7
      %vm949 = vcmp.eq.s32.totalorder %v948, %v906
      %v950 = vsel %vm949, 1.0, 0.0
      %v953 = vrot.slane %v945, 3
      %v954 = vrot.slane %v946, 3
      %v955 = vsel %vm825, %v953, %v954
      %vm956 = vcmask 23552
      %v957 = vsel %vm956, %v955, 0
      %vm959 = vcmask 1042432
      %v961 = vsel %vm959, %v950, 0
      %963 = vmatprep.subr.mxu0 0.0
      %964 = vmatpush1.msra.mxu0 %v961
      %965 = vmatprep.subr.mxu0 0.0
      %966 = vmatpush1.msra.mxu0 0.0
      %967 = vmatprep.subr.mxu0 0.0
      %968 = vmatpush1.msra.mxu0 0.0
      %969 = vmatprep.subr.mxu0 0.0
      %970 = vmatpush1.msra.mxu0 0.0
      %971 = vmatprep.subr.mxu0 0.0
      %972 = vmatpush1.msra.mxu0 0.0
      %973 = vmatprep.subr.mxu0 0.0
      %974 = vmatpush1.msra.mxu0 0.0
      %975 = vmatprep.subr.mxu0 0.0
      %976 = vmatpush1.msra.mxu0 0.0
      %977 = vmatprep.subr.mxu0 0.0
      %978 = vmatpush1.msra.mxu0 0.0
      %979 = vmatprep.subr.mxu0 0.0
      %980 = vmatpush1.msra.mxu0 0.0
      %981 = vmatprep.subr.mxu0 0.0
      %982 = vmatpush1.msra.mxu0 0.0
      %983 = vmatprep.subr.mxu0 0.0
      %984 = vmatpush1.msra.mxu0 0.0
      %985 = vmatprep.subr.mxu0 0.0
      %986 = vmatpush1.msra.mxu0 0.0
      %987 = vmatprep.subr.mxu0 0.0
      %988 = vmatpush1.msra.mxu0 0.0
      %989 = vmatprep.subr.mxu0 0.0
      %990 = vmatpush1.msra.mxu0 0.0
      %991 = vmatprep.subr.mxu0 0.0
      %992 = vmatpush1.msra.mxu0 0.0
      %993 = vmatprep.subr.mxu0 0.0
      %994 = vmatpush1.msra.mxu0 0.0
      %995 = vmatprep.subr.mxu0 0.0
      %996 = vmatpush1.msra.mxu0 0.0
      %997 = vmatprep.subr.mxu0 0.0
      %998 = vmatpush1.msra.mxu0 0.0
      %999 = vmatprep.subr.mxu0 0.0
      %1000 = vmatpush1.msra.mxu0 0.0
      %1001 = vmatprep.subr.mxu0 0.0
      %1002 = vmatpush1.msra.mxu0 0.0
      %1003 = vmatprep.subr.mxu0 0.0
      %1004 = vmatpush1.msra.mxu0 0.0
      %1005 = vmatprep.subr.mxu0 0.0
      %1006 = vmatpush1.msra.mxu0 0.0
      %1007 = vmatprep.subr.mxu0 0.0
      %1008 = vmatpush1.msra.mxu0 0.0
      %1009 = vmatprep.subr.mxu0 0.0
      %1010 = vmatpush1.msra.mxu0 0.0
      %1011 = vmatprep.subr.mxu0 0.0
      %1012 = vmatpush1.msra.mxu0 0.0
      %1013 = vmatprep.subr.mxu0 0.0
      %1014 = vmatpush1.msra.mxu0 0.0
      %1015 = vmatprep.subr.mxu0 0.0
      %1016 = vmatpush1.msra.mxu0 0.0
      %1017 = vmatprep.subr.mxu0 0.0
      %1018 = vmatpush1.msra.mxu0 0.0
      %1019 = vmatprep.subr.mxu0 0.0
      %1020 = vmatpush1.msra.mxu0 0.0
      %1021 = vmatprep.subr.mxu0 0.0
      %1022 = vmatpush1.msra.mxu0 0.0
      %1023 = vmatprep.subr.mxu0 0.0
      %1024 = vmatpush1.msra.mxu0 0.0
      %1025 = vmatprep.subr.mxu0 0.0
      %1026 = vmatpush1.msra.mxu0 0.0
      %1027 = vmatprep.mubr.f32.mxu0 0.0
      %1028 = vmatmul.mubr.f32.gmra.mrb[0].mxu0 %v957
      %v1029 = vpop.f32.mrb[0].mxu0
      %v1030 = vadd.f32 0.0, %v1029
      %v1031 = vpop.f32.mrb[0].mxu0
      %1032 = vdwg.mxu0
      %1033 = vst [vmem:[%s222] sm:$0xff] %v1030
      %p1034 = scmp.lt.s32.totalorder %s16, 3
      %s1035 = scalar_select %p1034, %s16, 3
      %s1036 = smul.addr %s1035, 8
      %s1037 = scalar_lea.vmem %s5, %s1036
      // Predicated region
      $region41: #{prototypical_forward_batch.1} parent=39 // pred_check
        %p1038 = pneg %p144
      $region42: #{prototypical_forward_batch.1} parent=39 // pred_check_branch
        %1040 = sbr.rel (%p1038) target = $region44
      $region43: #{prototypical_forward_batch.1} parent=39 // pred_region
        _
      $region44: #{prototypical_forward_batch.1} parent=39 // pred_fallthru
        _
    $region40: #{prototypical_forward_batch.1} parent=5 // pred_fallthru
      _
    %p1041 = scmp.le.s32.totalorder 2, %s11
    // Predicated region
    $region45: #{prototypical_forward_batch.1} parent=5 // pred_check
      %p1042 = pneg %p1041
    $region46: #{prototypical_forward_batch.1} parent=5 // pred_check_branch
      %1044 = sbr.rel (%p1042) target = $region48
    $region47: #{prototypical_forward_batch.1} parent=5 // pred_region
      %s1045 = ssub.s32 %s11, 2
      // Predicated region
      $region49: #{prototypical_forward_batch.1} parent=47 // pred_check
        %p1046 = pneg %p150
      $region50: #{prototypical_forward_batch.1} parent=47 // pred_check_branch
        %1048 = sbr.rel (%p1046) target = $region52
      $region51: #{prototypical_forward_batch.1} parent=47 // pred_region
        %p1049 = scmp.lt.s32.totalorder %s17, 3
        %s1050 = scalar_select %p1049, %s17, 3
        %s1051 = smul.addr %s1050, 8
        %s1052 = scalar_lea.vmem %s5, %s1051
      $region52: #{prototypical_forward_batch.1} parent=47 // pred_fallthru
        _
    $region48: #{prototypical_forward_batch.1} parent=5 // pred_fallthru
      _
  $region6: #{prototypical_forward_batch.1} parent=0 // loop_footer
    %s15 = sadd.s32 1, %s11
  $region7: #{prototypical_forward_batch.1} parent=0 // loop_footer_branch
    %10 = sbr.rel target = $region3
  $region8: #{prototypical_forward_batch.1} parent=0 // loop_exit
    _

</llo_original>
